<compile_context>
chip_gen: v5e
topology: v5e:2x2
jax: 0.10.0
libtpu: 0.0.40
codegen_flags: <defaults>
</compile_context>

<pallas_src>
import functools
import math

import jax
import jax.numpy as jnp
from jax import lax
from jax.experimental import pallas as pl
from jax.experimental.pallas import tpu as pltpu


_VMEM_LIMIT = 48 * 1024 * 1024  # fits v7x (64 MiB phys) and v5e/v6e (128 MiB)


def _cparams(*sem):
    return pltpu.CompilerParams(dimension_semantics=sem,
                                vmem_limit_bytes=_VMEM_LIMIT)


# ----------------------------------------------------------------------------
# Pallas kernels
# ----------------------------------------------------------------------------

def _linear_kernel(x_ref, w_ref, b_ref, o_ref, *, activation):
    y = jnp.dot(x_ref[...], w_ref[...], preferred_element_type=jnp.float32)
    y = y + b_ref[...]
    if activation == "relu":
        y = jnp.maximum(y, 0.0)
    o_ref[...] = y.astype(o_ref.dtype)


def pallas_linear(x, w, b, activation=None, tm=256):
    """y = x @ w + b (optional ReLU).  M-tiled, weight stays resident."""
    M, K = x.shape
    N = w.shape[1]
    tm = min(tm, M)
    kernel = functools.partial(_linear_kernel, activation=activation)
    return pl.pallas_call(
        kernel,
        out_shape=jax.ShapeDtypeStruct((M, N), x.dtype),
        grid=(pl.cdiv(M, tm),),
        in_specs=[
            pl.BlockSpec((tm, K), lambda i: (i, 0)),
            pl.BlockSpec((K, N), lambda i: (0, 0)),   # resident
            pl.BlockSpec((1, N), lambda i: (0, 0)),
        ],
        out_specs=pl.BlockSpec((tm, N), lambda i: (i, 0)),
        compiler_params=_cparams("parallel"),
    )(x, w, b.reshape(1, N))


def _linear_res_ln_kernel(x_ref, w_ref, b_ref, r_ref, g_ref, bb_ref, o_ref,
                          *, eps):
    # out-projection + residual add + LayerNorm1, fused.
    y = jnp.dot(x_ref[...], w_ref[...], preferred_element_type=jnp.float32)
    z = r_ref[...] + y + b_ref[...]
    mu = jnp.mean(z, axis=-1, keepdims=True)
    zc = z - mu
    var = jnp.mean(zc * zc, axis=-1, keepdims=True)
    inv = lax.rsqrt(var + eps)
    o_ref[...] = ((zc * inv) * g_ref[...] + bb_ref[...]).astype(o_ref.dtype)


def pallas_linear_res_ln(x, w, b, res, gamma, beta, eps=1e-5, tm=256):
    M, K = x.shape
    N = w.shape[1]
    tm = min(tm, M)
    return pl.pallas_call(
        functools.partial(_linear_res_ln_kernel, eps=eps),
        out_shape=jax.ShapeDtypeStruct((M, N), x.dtype),
        grid=(pl.cdiv(M, tm),),
        in_specs=[
            pl.BlockSpec((tm, K), lambda i: (i, 0)),
            pl.BlockSpec((K, N), lambda i: (0, 0)),
            pl.BlockSpec((1, N), lambda i: (0, 0)),
            pl.BlockSpec((tm, N), lambda i: (i, 0)),
            pl.BlockSpec((1, N), lambda i: (0, 0)),
            pl.BlockSpec((1, N), lambda i: (0, 0)),
        ],
        out_specs=pl.BlockSpec((tm, N), lambda i: (i, 0)),
        compiler_params=_cparams("parallel"),
    )(x, w, b.reshape(1, N), res, gamma.reshape(1, N), beta.reshape(1, N))


def _ffn_ln_kernel(x_ref, w1_ref, b1_ref, w2_ref, b2_ref, g_ref, bb_ref,
                   o_ref, *, eps):
    # linear1 + ReLU + linear2 + residual + LayerNorm2; the (tm, ffd)
    # intermediate stays in VMEM for the whole block.
    x = x_ref[...]
    h = jnp.dot(x, w1_ref[...], preferred_element_type=jnp.float32)
    h = jnp.maximum(h + b1_ref[...], 0.0)
    y = jnp.dot(h, w2_ref[...], preferred_element_type=jnp.float32)
    z = x + y + b2_ref[...]
    mu = jnp.mean(z, axis=-1, keepdims=True)
    zc = z - mu
    var = jnp.mean(zc * zc, axis=-1, keepdims=True)
    inv = lax.rsqrt(var + eps)
    o_ref[...] = ((zc * inv) * g_ref[...] + bb_ref[...]).astype(o_ref.dtype)


def pallas_ffn_ln(x, w1, b1, w2, b2, gamma, beta, eps=1e-5, tm=256):
    M, D = x.shape
    F = w1.shape[1]
    tm = min(tm, M)
    return pl.pallas_call(
        functools.partial(_ffn_ln_kernel, eps=eps),
        out_shape=jax.ShapeDtypeStruct((M, D), x.dtype),
        grid=(pl.cdiv(M, tm),),
        in_specs=[
            pl.BlockSpec((tm, D), lambda i: (i, 0)),
            pl.BlockSpec((D, F), lambda i: (0, 0)),
            pl.BlockSpec((1, F), lambda i: (0, 0)),
            pl.BlockSpec((F, D), lambda i: (0, 0)),
            pl.BlockSpec((1, D), lambda i: (0, 0)),
            pl.BlockSpec((1, D), lambda i: (0, 0)),
            pl.BlockSpec((1, D), lambda i: (0, 0)),
        ],
        out_specs=pl.BlockSpec((tm, D), lambda i: (i, 0)),
        compiler_params=_cparams("parallel"),
    )(x, w1, b1.reshape(1, F), w2, b2.reshape(1, D),
      gamma.reshape(1, D), beta.reshape(1, D))


def _attn_kernel(qkv_ref, m_ref, o_ref, *, head, scale):
    qkv = qkv_ref[0]                       # (T, 3D), natural layout
    m = m_ref[0]                           # (1, T) additive key-padding mask
    D3 = qkv.shape[-1]
    D = D3 // 3
    Dh = D // head
    q = qkv[:, :D]
    k = qkv[:, D:2 * D]
    v = qkv[:, 2 * D:]
    outs = []
    for h in range(head):                  # static unroll; heads split in-VMEM
        sl = slice(h * Dh, (h + 1) * Dh)
        s = lax.dot_general(q[:, sl], k[:, sl],
                            (((1,), (1,)), ((), ())),
                            preferred_element_type=jnp.float32)
        s = s * scale + m                  # f32 score path (mask + softmax)
        s = s - jnp.max(s, axis=-1, keepdims=True)
        p = jnp.exp(s)
        p = p * pl.reciprocal(jnp.sum(p, axis=-1, keepdims=True), approx=True)
        outs.append(jnp.dot(p, v[:, sl], preferred_element_type=jnp.float32))
    out = jnp.concatenate(outs, axis=-1)   # (T, D), single lane-dense store
    o_ref[...] = out[None].astype(o_ref.dtype)


def pallas_attention(qkv, mask_add, head):
    """Self-attention with key-padding mask.  qkv: (B, T, 3D) (q|k|v packed),
    mask_add: (B, 1, T) additive (0 / -1e9)."""
    B, T, D3 = qkv.shape
    D = D3 // 3
    scale = 1.0 / math.sqrt(D // head)
    kernel = functools.partial(_attn_kernel, head=head, scale=scale)
    return pl.pallas_call(
        kernel,
        out_shape=jax.ShapeDtypeStruct((B, T, D), qkv.dtype),
        grid=(B,),
        in_specs=[
            pl.BlockSpec((1, T, D3), lambda b: (b, 0, 0)),
            pl.BlockSpec((1, 1, T), lambda b: (b, 0, 0)),
        ],
        out_specs=pl.BlockSpec((1, T, D), lambda b: (b, 0, 0)),
        compiler_params=_cparams("parallel"),
    )(qkv, mask_add)


def _feat_pe_kernel(p_ref, w_ref, b_ref, pe_ref, o_ref):
    p = p_ref[0]                                        # (Tp, Kp)
    y = jnp.dot(p, w_ref[...], preferred_element_type=jnp.float32)
    y = y + b_ref[...] + pe_ref[...]
    o_ref[...] = y[None].astype(o_ref.dtype)


def pallas_feature_pe(patches, w, b, pe):
    """Strided-conv-as-matmul feature front-end fused with the positional
    encoding add.  patches: (B, Tp, Kp) (patch dim zero-padded), w: (Kp, D)."""
    B, Tp, Kp = patches.shape
    D = w.shape[1]
    return pl.pallas_call(
        _feat_pe_kernel,
        out_shape=jax.ShapeDtypeStruct((B, Tp, D), patches.dtype),
        grid=(B,),
        in_specs=[
            pl.BlockSpec((1, Tp, Kp), lambda b: (b, 0, 0)),
            pl.BlockSpec((Kp, D), lambda b: (0, 0)),
            pl.BlockSpec((1, D), lambda b: (0, 0)),
            pl.BlockSpec((Tp, D), lambda b: (0, 0)),
        ],
        out_specs=pl.BlockSpec((1, Tp, D), lambda b: (b, 0, 0)),
        compiler_params=_cparams("parallel"),
    )(patches, w, b.reshape(1, D), pe)


def _fc1_logsoftmax_kernel(x_ref, w_ref, b_ref, o_ref):
    y = jnp.dot(x_ref[...], w_ref[...], preferred_element_type=jnp.float32)
    y = y + b_ref[...]
    m = jnp.max(y, axis=-1, keepdims=True)
    z = y - m
    lse = jnp.log(jnp.sum(jnp.exp(z), axis=-1, keepdims=True))
    o_ref[...] = (z - lse).astype(o_ref.dtype)


def pallas_fc1_log_softmax(x, w, b, vocab, tm=256):
    """Fused fc1 + log_softmax with the vocab axis padded to a lane-dense
    width.  Padded logits get a -1e30 bias so they vanish under softmax; the
    real `vocab` columns are sliced back outside."""
    M, D = x.shape
    V = w.shape[1]
    Vp = ((V + 127) // 128) * 128
    w_p = jnp.zeros((D, Vp), x.dtype).at[:, :V].set(w)
    b_p = jnp.full((1, Vp), -1e30, x.dtype).at[0, :V].set(b)
    tm = min(tm, M)
    out = pl.pallas_call(
        _fc1_logsoftmax_kernel,
        out_shape=jax.ShapeDtypeStruct((M, Vp), x.dtype),
        grid=(pl.cdiv(M, tm),),
        in_specs=[
            pl.BlockSpec((tm, D), lambda i: (i, 0)),
            pl.BlockSpec((D, Vp), lambda i: (0, 0)),
            pl.BlockSpec((1, Vp), lambda i: (0, 0)),
        ],
        out_specs=pl.BlockSpec((tm, Vp), lambda i: (i, 0)),
        compiler_params=_cparams("parallel"),
    )(x, w_p, b_p)
    return out[:, :vocab]


# ----------------------------------------------------------------------------
# Model pieces (glue around the kernels)
# ----------------------------------------------------------------------------

def sinusoidal_position_encoding(T, D):
    # FunASR-style SinusoidalPositionEncoder: positions start at 1,
    # encoding = concat(sin, cos) over D/2 timescales, log inc / (D/2 - 1).
    pos = jnp.arange(1, T + 1, dtype=jnp.float32)[:, None]
    half = D // 2
    log_inc = math.log(10000.0) / (half - 1)
    inv = jnp.exp(jnp.arange(half, dtype=jnp.float32) * -log_inc)
    scaled = pos * inv[None, :]
    return jnp.concatenate([jnp.sin(scaled), jnp.cos(scaled)], axis=1)  # (T,D)


def encoder_layer_forward(x, mask_add, lp, head):
    """One post-norm nn.TransformerEncoderLayer (eval mode, dropout = id).
    4 pallas_calls: QKV linear, fused attention, out-proj+res+LN1, FFN+LN2."""
    B, T, D = x.shape
    xf = x.reshape(B * T, D)

    qkv = pallas_linear(xf, lp["w_qkv"], lp["b_qkv"])                # (B*T,3D)
    attn = pallas_attention(qkv.reshape(B, T, 3 * D), mask_add, head)
    x1 = pallas_linear_res_ln(attn.reshape(B * T, D),
                              lp["w_out"], lp["b_out"], xf,
                              lp["ln1_g"], lp["ln1_b"])
    x2 = pallas_ffn_ln(x1, lp["w_ff1"], lp["b_ff1"],
                       lp["w_ff2"], lp["b_ff2"],
                       lp["ln2_g"], lp["ln2_b"])
    return x2.reshape(B, T, D)


def model_forward(params, signal, signal_lengths):
    """Eval-mode, decode_method='ctc' forward.  Returns ctc_in: (T', B, V)."""
    B, C, T = signal.shape
    stride = params["stride"]
    dim = params["dim"]
    head = params["head"]
    vocab = params["vocab"]

    # signal = signal[:, :, :signal_lengths.max()] — inputs are built trimmed.
    encoder_out_lens = jnp.ceil(signal_lengths.astype(jnp.float32) / stride
                                ).astype(jnp.int32)
    Tp = T // stride
    # TODO(synk): assumes T % stride == 0 (true for the trimmed inputs used
    # here); otherwise the patch reshape below would need right-padding.

    # key-padding mask (True where padded) -> additive mask on attention keys
    pos = jnp.arange(Tp, dtype=jnp.int32)[None, :]
    pad_mask = pos >= encoder_out_lens[:, None]                      # (B, Tp)
    mask_add = jnp.where(pad_mask, -1e9, 0.0).astype(jnp.float32)[:, None, :]

    # Feature_extract: Conv1d(in=1, out=dim, kernel=stride, stride=stride) as
    # a patch matmul with the patch dim zero-padded to a sublane multiple,
    # fused with the positional-encoding add.
    # TODO(synk): exact Feature_extract architecture is not in the provided
    # source; a single strided conv matching encoder_out_lens is used.
    patches = signal[:, 0, :].reshape(B, Tp, stride)
    Kp = ((stride + 7) // 8) * 8
    patches = jnp.pad(patches, ((0, 0), (0, 0), (0, Kp - stride)))
    w_feat_p = jnp.pad(params["w_feat"], ((0, Kp - stride), (0, 0)))
    pe = sinusoidal_position_encoding(Tp, dim)
    x = pallas_feature_pe(patches, w_feat_p, params["b_feat"], pe)   # (B,Tp,D)

    # TransformerEncoder (num_layers * 2 post-norm layers)
    for lp in params["enc_layers"]:
        x = encoder_layer_forward(x, mask_add, lp, head)

    # dropout (eval: identity) -> fc1 -> log_softmax -> permute(1, 0, 2)
    xf = x.reshape(B * Tp, dim)
    ctc = pallas_fc1_log_softmax(xf, params["w_fc1"], params["b_fc1"], vocab)
    ctc_in = jnp.transpose(ctc.reshape(B, Tp, vocab), (1, 0, 2))     # (T',B,V)
    return ctc_in, encoder_out_lens


# ----------------------------------------------------------------------------
# Deterministic parameter init
# ----------------------------------------------------------------------------

def init_params(key, *, dim, head, ffd, vocab, stride, num_layers):
    n_enc = num_layers * 2
    scale = 0.02

    def nrm(k, shape):
        return (scale * jax.random.normal(k, shape)).astype(jnp.float32)

    keys = jax.random.split(key, 2 + 6 * n_enc)
    ki = iter(range(len(keys)))

    params = {
        "dim": dim, "head": head, "vocab": vocab, "stride": stride,
        "w_feat": nrm(keys[next(ki)], (stride, dim)),
        "b_feat": jnp.zeros((dim,), jnp.float32),
        "w_fc1": nrm(keys[next(ki)], (dim, vocab)),
        "b_fc1": jnp.zeros((vocab,), jnp.float32),
        "enc_layers": [],
    }
    for _ in range(n_enc):
        lp = {
            "w_qkv": nrm(keys[next(ki)], (dim, 3 * dim)),
            "b_qkv": jnp.zeros((3 * dim,), jnp.float32),
            "w_out": nrm(keys[next(ki)], (dim, dim)),
            "b_out": jnp.zeros((dim,), jnp.float32),
            "w_ff1": nrm(keys[next(ki)], (dim, ffd)),
            "b_ff1": jnp.zeros((ffd,), jnp.float32),
            "w_ff2": nrm(keys[next(ki)], (ffd, dim)),
            "b_ff2": jnp.zeros((dim,), jnp.float32),
            "ln1_g": jnp.ones((dim,), jnp.float32),
            "ln1_b": jnp.zeros((dim,), jnp.float32),
            "ln2_g": jnp.ones((dim,), jnp.float32),
            "ln2_b": jnp.zeros((dim,), jnp.float32),
        }
        params["enc_layers"].append(lp)
    return params


# ----------------------------------------------------------------------------
# Run
# ----------------------------------------------------------------------------

if __name__ == "__main__":
    key = jax.random.PRNGKey(0)
    k_sig, k_par = jax.random.split(key)

    # Small shapes consistent with the module: dim=128 (vs 512), head=8,
    # ffd=256 (vs 2048), vocab=5, stride=5, num_layers=1 -> 2 encoder layers.
    B, C, T = 2, 1, 160
    dim, head, ffd, vocab, stride, num_layers = 128, 8, 256, 5, 5, 1

    signal = jax.random.normal(k_sig, (B, C, T), dtype=jnp.float32)
    signal_lengths = jnp.array([160, 150], dtype=jnp.int32)

    params = init_params(k_par, dim=dim, head=head, ffd=ffd, vocab=vocab,
                         stride=stride, num_layers=num_layers)

    ctc_in, enc_lens = model_forward(params, signal, signal_lengths)
    jax.block_until_ready(ctc_in)

    assert ctc_in.shape == (T // stride, B, vocab)
    # log_softmax rows sum to 1 in prob space
    assert bool(jnp.allclose(jnp.exp(ctc_in).sum(-1), 1.0, atol=1e-4))
    print("KERNEL_OK")
</pallas_src>

<mosaic_0001>
module attributes {stable_mosaic.version = 11 : i64} {
  func.func @_feat_pe_kernel(%arg0: i32, %arg1: memref<1x32x8xf32, #tpu.memory_space<vmem>>, %arg2: memref<8x128xf32, #tpu.memory_space<vmem>>, %arg3: memref<1x128xf32, #tpu.memory_space<vmem>>, %arg4: memref<32x128xf32, #tpu.memory_space<vmem>>, %arg5: memref<1x32x128xf32, #tpu.memory_space<vmem>>) attributes {dimension_semantics = [#tpu.dimension_semantics<parallel>], iteration_bounds = array<i64: 2>, scalar_prefetch = 0 : i64, scratch_operands = 0 : i64, tpu.core_type = #tpu.core_type<tc>, window_params = [{transform_indices = @transform_0, window_bounds = array<i64: 1, 32, 8>}, {pipeline_mode = #tpu.pipeline_mode<synchronous>, transform_indices = @transform_1, window_bounds = array<i64: 8, 128>}, {pipeline_mode = #tpu.pipeline_mode<synchronous>, transform_indices = @transform_2, window_bounds = array<i64: 1, 128>}, {pipeline_mode = #tpu.pipeline_mode<synchronous>, transform_indices = @transform_3, window_bounds = array<i64: 32, 128>}, {transform_indices = @transform_4, window_bounds = array<i64: 1, 32, 128>}]} {
    %c0 = arith.constant 0 : index
    %c0_0 = arith.constant 0 : index
    %c0_1 = arith.constant 0 : index
    %0 = vector.load %arg1[%c0, %c0_0, %c0_1] : memref<1x32x8xf32, #tpu.memory_space<vmem>>, vector<1x32x8xf32>
    %1 = vector.shape_cast %0 : vector<1x32x8xf32> to vector<32x8xf32>
    %c0_2 = arith.constant 0 : index
    %c0_3 = arith.constant 0 : index
    %2 = vector.load %arg2[%c0_2, %c0_3] : memref<8x128xf32, #tpu.memory_space<vmem>>, vector<8x128xf32>
    %cst = arith.constant dense<0.000000e+00> : vector<32x128xf32>
    %3 = tpu.matmul %1, %2, %cst {dimension_numbers = #tpu.dot_dimension_numbers<[1], [0], [0], [1], [0, 0, 1, 1], [], []>} : vector<32x8xf32>, vector<8x128xf32>, vector<32x128xf32> -> vector<32x128xf32>
    %c0_4 = arith.constant 0 : index
    %c0_5 = arith.constant 0 : index
    %4 = vector.load %arg3[%c0_4, %c0_5] : memref<1x128xf32, #tpu.memory_space<vmem>>, vector<1x128xf32>
    %5 = vector.broadcast %4 : vector<1x128xf32> to vector<32x128xf32>
    %6 = arith.addf %3, %5 : vector<32x128xf32>
    %c0_6 = arith.constant 0 : index
    %c0_7 = arith.constant 0 : index
    %7 = vector.load %arg4[%c0_6, %c0_7] : memref<32x128xf32, #tpu.memory_space<vmem>>, vector<32x128xf32>
    %8 = arith.addf %6, %7 : vector<32x128xf32>
    %9 = vector.shape_cast %8 : vector<32x128xf32> to vector<1x32x128xf32>
    %c0_8 = arith.constant 0 : index
    %c0_9 = arith.constant 0 : index
    %c0_10 = arith.constant 0 : index
    %10 = vector.load %arg5[%c0_8, %c0_9, %c0_10] : memref<1x32x128xf32, #tpu.memory_space<vmem>>, vector<1x32x128xf32>
    tpu.vector_store %arg5[%c0_8, %c0_9, %c0_10], %9 {strides = array<i32>} : memref<1x32x128xf32, #tpu.memory_space<vmem>>, vector<1x32x128xf32>,
    return
  }
  func.func @transform_0(%arg0: i32) -> (i32, i32, i32) {
    %c0_i32 = arith.constant 0 : i32
    %c0_i32_0 = arith.constant 0 : i32
    %c0_i32_1 = arith.constant 0 : i32
    return %arg0, %c0_i32, %c0_i32_0 : i32, i32, i32
  }
  func.func @transform_1(%arg0: i32) -> (i32, i32) {
    %c0_i32 = arith.constant 0 : i32
    %c0_i32_0 = arith.constant 0 : i32
    %c0_i32_1 = arith.constant 0 : i32
    return %c0_i32, %c0_i32_0 : i32, i32
  }
  func.func @transform_2(%arg0: i32) -> (i32, i32) {
    %c0_i32 = arith.constant 0 : i32
    %c0_i32_0 = arith.constant 0 : i32
    %c0_i32_1 = arith.constant 0 : i32
    return %c0_i32, %c0_i32_0 : i32, i32
  }
  func.func @transform_3(%arg0: i32) -> (i32, i32) {
    %c0_i32 = arith.constant 0 : i32
    %c0_i32_0 = arith.constant 0 : i32
    %c0_i32_1 = arith.constant 0 : i32
    return %c0_i32, %c0_i32_0 : i32, i32
  }
  func.func @transform_4(%arg0: i32) -> (i32, i32, i32) {
    %c0_i32 = arith.constant 0 : i32
    %c0_i32_0 = arith.constant 0 : i32
    %c0_i32_1 = arith.constant 0 : i32
    return %arg0, %c0_i32, %c0_i32_0 : i32, i32, i32
  }
}

</mosaic_0001>

<llo_original>
// kernel: tpu_custom_call.1
$region0: #{tpu_custom_call.1}
  #allocation0 [shape = 'u32[]', space=smem, size = 0x4, offset = 0x4, fixed_abs, tag = 'smem constant byte address 0x4 - core index']
  #allocation1 [shape = 'u32[72,128]{1,0:T(1,128)}', space=vmem, size = 0x9000, scoped, tag = 'internal scratch']
  %s0 = inlined_call_operand.vmem [shape: f32[2,32,8], index: 0, kind: input, shape index: {}]
  %s1 = inlined_call_operand.vmem [shape: f32[8,128], index: 1, kind: input, shape index: {}]
  %s2 = inlined_call_operand.vmem [shape: f32[1,128], index: 2, kind: input, shape index: {}]
  %s3 = inlined_call_operand.vmem [shape: f32[32,128], index: 3, kind: input, shape index: {}]
  %s4 = inlined_call_operand.hbm [shape: f32[2,32,128], index: 4, kind: output, shape index: {}]
  %s5 = sld [smem:[#allocation0]]
  $region49: #{tpu_custom_call.1} parent=0
    _
  %s7 = ssub.s32 1, %s5
  %s8 = scalar_select 0, %s7, %s5
  $region1: #{tpu_custom_call.1} parent=0
    #allocation2 [shape = 'u8[32768]{0}', space=vmem, size = 0x8000, scoped, tag = 'output window, operand 0']
    #allocation3 [shape = 's32[2]{0}', space=sflag, size = 0x8, scoped, tag = 'scoped memory for tpu_custom_call.1']
    %9 = vsyncpa [#allocation3], 0
    %s10 = scalar_lea.sflag [#allocation3], 1
    %11 = vsyncpa %s10, 0
    loop: start=0, step=1, limit=4
    $region2: #{tpu_custom_call.1} parent=1 // loop_pre_header
      _
    $region3: #{tpu_custom_call.1} parent=1 // loop_header
      %s13 = sphi 0, %s17
      %p14 = scmp.ge.s32.totalorder %s13, 4
      %s23 = sphi 0, %s25
      %s26 = sphi 0, %s23
      %s27 = sphi 0, %s26
      %s43 = sphi 0, %s27
      %s47 = sphi 0, %s47
      %s49 = sphi 0, %s47
      %s50 = sphi 0, %s49
      %s64 = sphi 0, %s50
      %s68 = sphi 0, %s68
      %s70 = sphi 0, %s68
      %s71 = sphi 0, %s70
      %s85 = sphi 0, %s71
      %s89 = sphi 0, %s89
      %s91 = sphi 0, %s89
      %s92 = sphi 0, %s91
      %s106 = sphi 0, %s92
      %s112 = sphi 0, %s114
      %s115 = sphi 0, %s112
      %s116 = sphi 0, %s115
      %s132 = sphi 0, %s116
    $region4: #{tpu_custom_call.1} parent=1 // loop_header_branch
      %16 = sbr.rel (%p14) target = $region8
    $region5: #{tpu_custom_call.1} parent=1 // loop_body
      %s18 = ssub.s32 %s13, 1
      %s19 = ssub.s32 %s13, 2
      %s20 = sadd.s32 %s13, 1
      %s21 = ssub.s32 %s13, %s20
      %p22 = scmp.eq.s32.totalorder %s21, 0
      %s24 = sadd.s32 %s23, 1
      %s25 = scalar_select %p22, %s23, %s24
      %p28 = pneg %p22
      %p29 = scmp.eq.s32.totalorder %s13, 1
      %p30 = por %p28, %p29
      %p31 = scmp.ne.s32.totalorder %s23, %s26
      %p32 = scmp.eq.s32.totalorder %s13, 0
      %p33 = por %p31, %p32
      %p34 = scmp.ne.s32.totalorder %s23, %s26
      %p35 = scmp.eq.s32.totalorder %s18, 1
      %p36 = por %p34, %p35
      %p37 = scmp.ne.s32.totalorder %s26, %s27
      %p38 = scmp.eq.s32.totalorder %s18, 0
      %p39 = por %p37, %p38
      %p40 = scmp.ne.s32.totalorder %s26, %s27
      %p41 = scmp.eq.s32.totalorder %s19, 1
      %p42 = por %p40, %p41
      %p44 = scmp.ne.s32.totalorder %s27, %s43
      %p45 = scmp.eq.s32.totalorder %s19, 0
      %p46 = por %p44, %p45
      %s48 = sadd.s32 %s47, 1
      %p51 = scmp.eq.s32.totalorder %s13, 1
      %p52 = scmp.ne.s32.totalorder %s47, %s49
      %p53 = scmp.eq.s32.totalorder %s13, 0
      %p54 = por %p52, %p53
      %p55 = scmp.ne.s32.totalorder %s47, %s49
      %p56 = scmp.eq.s32.totalorder %s18, 1
      %p57 = por %p55, %p56
      %p58 = scmp.ne.s32.totalorder %s49, %s50
      %p59 = scmp.eq.s32.totalorder %s18, 0
      %p60 = por %p58, %p59
      %p61 = scmp.ne.s32.totalorder %s49, %s50
      %p62 = scmp.eq.s32.totalorder %s19, 1
      %p63 = por %p61, %p62
      %p65 = scmp.ne.s32.totalorder %s50, %s64
      %p66 = scmp.eq.s32.totalorder %s19, 0
      %p67 = por %p65, %p66
      %s69 = sadd.s32 %s68, 1
      %p72 = scmp.eq.s32.totalorder %s13, 1
      %p73 = scmp.ne.s32.totalorder %s68, %s70
      %p74 = scmp.eq.s32.totalorder %s13, 0
      %p75 = por %p73, %p74
      %p76 = scmp.ne.s32.totalorder %s68, %s70
      %p77 = scmp.eq.s32.totalorder %s18, 1
      %p78 = por %p76, %p77
      %p79 = scmp.ne.s32.totalorder %s70, %s71
      %p80 = scmp.eq.s32.totalorder %s18, 0
      %p81 = por %p79, %p80
      %p82 = scmp.ne.s32.totalorder %s70, %s71
      %p83 = scmp.eq.s32.totalorder %s19, 1
      %p84 = por %p82, %p83
      %p86 = scmp.ne.s32.totalorder %s71, %s85
      %p87 = scmp.eq.s32.totalorder %s19, 0
      %p88 = por %p86, %p87
      %s90 = sadd.s32 %s89, 1
      %p93 = scmp.eq.s32.totalorder %s13, 1
      %p94 = scmp.ne.s32.totalorder %s89, %s91
      %p95 = scmp.eq.s32.totalorder %s13, 0
      %p96 = por %p94, %p95
      %p97 = scmp.ne.s32.totalorder %s89, %s91
      %p98 = scmp.eq.s32.totalorder %s18, 1
      %p99 = por %p97, %p98
      %p100 = scmp.ne.s32.totalorder %s91, %s92
      %p101 = scmp.eq.s32.totalorder %s18, 0
      %p102 = por %p100, %p101
      %p103 = scmp.ne.s32.totalorder %s91, %s92
      %p104 = scmp.eq.s32.totalorder %s19, 1
      %p105 = por %p103, %p104
      %p107 = scmp.ne.s32.totalorder %s92, %s106
      %p108 = scmp.eq.s32.totalorder %s19, 0
      %p109 = por %p107, %p108
      %s110 = ssub.s32 %s13, %s20
      %p111 = scmp.eq.s32.totalorder %s110, 0
      %s113 = sadd.s32 %s112, 1
      %s114 = scalar_select %p111, %s112, %s113
      %p117 = pneg %p111
      %p118 = scmp.eq.s32.totalorder %s13, 1
      %p119 = por %p117, %p118
      %p120 = scmp.ne.s32.totalorder %s112, %s115
      %p121 = scmp.eq.s32.totalorder %s13, 0
      %p122 = por %p120, %p121
      %p123 = scmp.ne.s32.totalorder %s112, %s115
      %p124 = scmp.eq.s32.totalorder %s18, 1
      %p125 = por %p123, %p124
      %p126 = scmp.ne.s32.totalorder %s115, %s116
      %p127 = scmp.eq.s32.totalorder %s18, 0
      %p128 = por %p126, %p127
      %p129 = scmp.ne.s32.totalorder %s115, %s116
      %p130 = scmp.eq.s32.totalorder %s19, 1
      %p131 = por %p129, %p130
      %p133 = scmp.ne.s32.totalorder %s116, %s132
      %p134 = scmp.eq.s32.totalorder %s19, 0
      %p135 = por %p133, %p134
      %p136 = scmp.le.s32.totalorder 1, %s13
      %p137 = scmp.lt.s32.totalorder %s13, 3
      %p138 = pnand %p136, %p137
      %p139 = pneg %p138
      // Predicated region
      $region9: #{tpu_custom_call.1} parent=5 // pred_check
        _
      $region10: #{tpu_custom_call.1} parent=5 // pred_check_branch
        %141 = sbr.rel (%p138) target = $region12
      $region11: #{tpu_custom_call.1} parent=5 // pred_region
        %s142 = ssub.s32 %s13, 1
        // Predicated region
        $region13: #{tpu_custom_call.1} parent=11 // pred_check
          %p143 = pneg %p60
        $region14: #{tpu_custom_call.1} parent=11 // pred_check_branch
          %145 = sbr.rel (%p143) target = $region16
        $region15: #{tpu_custom_call.1} parent=11 // pred_region
          _
        $region16: #{tpu_custom_call.1} parent=11 // pred_fallthru
          _
        // Predicated region
        $region17: #{tpu_custom_call.1} parent=11 // pred_check
          %p146 = pneg %p81
        $region18: #{tpu_custom_call.1} parent=11 // pred_check_branch
          %148 = sbr.rel (%p146) target = $region20
        $region19: #{tpu_custom_call.1} parent=11 // pred_region
          _
        $region20: #{tpu_custom_call.1} parent=11 // pred_fallthru
          _
        // Predicated region
        $region21: #{tpu_custom_call.1} parent=11 // pred_check
          %p149 = pneg %p102
        $region22: #{tpu_custom_call.1} parent=11 // pred_check_branch
          %151 = sbr.rel (%p149) target = $region24
        $region23: #{tpu_custom_call.1} parent=11 // pred_region
          _
        $region24: #{tpu_custom_call.1} parent=11 // pred_fallthru
          _
      $region12: #{tpu_custom_call.1} parent=5 // pred_fallthru
        _
      %p152 = scmp.lt.s32.totalorder %s13, 2
      // Predicated region
      $region25: #{tpu_custom_call.1} parent=5 // pred_check
        %p153 = pneg %p152
      $region26: #{tpu_custom_call.1} parent=5 // pred_check_branch
        %155 = sbr.rel (%p153) target = $region28
      $region27: #{tpu_custom_call.1} parent=5 // pred_region
        // Predicated region
        $region29: #{tpu_custom_call.1} parent=27 // pred_check
          %p156 = pneg %p33
        $region30: #{tpu_custom_call.1} parent=27 // pred_check_branch
          %158 = sbr.rel (%p156) target = $region32
        $region31: #{tpu_custom_call.1} parent=27 // pred_region
          %p159 = scmp.lt.s32.totalorder %s13, 1
          %s160 = scalar_select %p159, %s13, 1
          %s161 = smul.addr %s160, 4
          %s162 = smul.addr %s161, 8
          %s163 = scalar_lea.vmem %s0, %s162
        $region32: #{tpu_custom_call.1} parent=27 // pred_fallthru
          _
      $region28: #{tpu_custom_call.1} parent=5 // pred_fallthru
        _
      %p164 = scmp.le.s32.totalorder 1, %s13
      %p165 = scmp.lt.s32.totalorder %s13, 3
      %p166 = pnand %p164, %p165
      %p167 = pneg %p166
      // Predicated region
      $region33: #{tpu_custom_call.1} parent=5 // pred_check
        _
      $region34: #{tpu_custom_call.1} parent=5 // pred_check_branch
        %169 = sbr.rel (%p166) target = $region36
      $region35: #{tpu_custom_call.1} parent=5 // pred_region
        %s170 = ssub.s32 %s13, 1
        %p171 = scmp.lt.s32.totalorder %s18, 1
        %s172 = scalar_select %p171, %s18, 1
        %s173 = smul.addr %s172, 4
        %s174 = smul.addr %s173, 8
        %s175 = scalar_lea.vmem %s0, %s174
        %p176 = pneg %p39
        %p177 = pneg %p36
        %p178 = pneg %p60
        %p179 = pneg %p57
        %p180 = pneg %p81
        %p181 = pneg %p78
        %p182 = pneg %p102
        %p183 = pneg %p99
        %p184 = pneg %p128
        %p185 = pneg %p125
        %s186 = sand.u32 %s115, 1
        %s187 = scalar_lea.sflag [#allocation3], %s186
        %s188 = sand.u32 %s115, 1
        %s189 = smul.addr %s188, 32
        %s190 = scalar_lea.vmem [#allocation2], %s189
        %p191 = scmp.lt.s32.totalorder %s18, 1
        %s192 = scalar_select %p191, %s18, 1
        %s193 = smul.addr %s192, 4
        %s194 = smul.addr %s193, 8
        %s195 = scalar_lea.vmem %s0, %s194
        %v196 = vld [vmem:[%s195] sm:$0xff]
        %v197 = vld [vmem:[%s195 + $0x8] sm:$0xff]
        %v198 = vld [vmem:[%s195 + $0x10] sm:$0xff]
        %v199 = vld [vmem:[%s195 + $0x18] sm:$0xff]
        %v200 = vld [vmem:[%s1] sm:$0xff]
        %v201 = vld [vmem:[%s2] sm:$0x1]
        %v203 = vperm.slane %v201, 0
        %vm205 = vcmask 64512
        %v207 = vsel %vm205, %v196, 0
        %v210 = vsel %vm205, %v197, 0
        %v213 = vsel %vm205, %v198, 0
        %v216 = vsel %vm205, %v199, 0
        %218 = vmatpush.msra.mxu0 0.0
        %219 = vmatpush.msra.mxu0 0.0
        %220 = vmatpush.msra.mxu0 0.0
        %221 = vmatpush.msra.mxu0 0.0
        %222 = vmatpush.msra.mxu0 0.0
        %223 = vmatpush.msra.mxu0 0.0
        %224 = vmatpush.msra.mxu0 0.0
        %225 = vmatpush.msra.mxu0 0.0
        %226 = vmatpush.msra.mxu0 0.0
        %227 = vmatpush.msra.mxu0 0.0
        %228 = vmatpush.msra.mxu0 0.0
        %229 = vmatpush.msra.mxu0 0.0
        %230 = vmatpush.msra.mxu0 0.0
        %231 = vmatpush.msra.mxu0 0.0
        %232 = vmatpush.msra.mxu0 0.0
        %233 = vmatpush.msra.mxu0 %v200
        %234 = vmatmul.f32.gmra.mxu0 %v207
        %v235 = vpop.f32.mrf.mxu0
        %v236 = vadd.f32 %v203, %v235
        %237 = vmatmul.f32.gmra.mxu0 %v210
        %v238 = vpop.f32.mrf.mxu0
        %v239 = vadd.f32 %v203, %v238
        %240 = vmatmul.f32.gmra.mxu0 %v213
        %v241 = vpop.f32.mrf.mxu0
        %v242 = vadd.f32 %v203, %v241
        %243 = vmatmul.f32.gmra.mxu0 %v216
        %v244 = vpop.f32.mrf.mxu0
        %v245 = vadd.f32 %v203, %v244
        %246 = vdwg.mxu0
        %v247 = vld [vmem:[%s3] sm:$0xff]
        %v248 = vld [vmem:[%s3 + $0x8] sm:$0xff]
        %v249 = vld [vmem:[%s3 + $0x10] sm:$0xff]
        %v250 = vld [vmem:[%s3 + $0x18] sm:$0xff]
        %v251 = vadd.f32 %v236, %v247
        %v252 = vadd.f32 %v239, %v248
        %v253 = vadd.f32 %v242, %v249
        %v254 = vadd.f32 %v245, %v250
        %255 = vst [vmem:[%s190] sm:$0xff] %v251
        %256 = vst [vmem:[%s190 + $0x8] sm:$0xff] %v252
        %257 = vst [vmem:[%s190 + $0x10] sm:$0xff] %v253
        %258 = vst [vmem:[%s190 + $0x18] sm:$0xff] %v254
        %s259 = sand.u32 %s115, 1
        %s260 = scalar_lea.sflag [#allocation3], %s259
        %s261 = sand.u32 %s115, 1
        %s262 = smul.addr %s261, 32
        %s263 = scalar_lea.vmem [#allocation2], %s262
        // Predicated region
        $region37: #{tpu_custom_call.1} parent=35 // pred_check
          %p264 = pneg %p125
        $region38: #{tpu_custom_call.1} parent=35 // pred_check_branch
          %266 = sbr.rel (%p264) target = $region40
        $region39: #{tpu_custom_call.1} parent=35 // pred_region
          %268 = vsyncadd %s260, 0
          %s269 = smul.addr %s18, 4
          %s270 = smul.addr %s269, 8
          %s271 = scalar_lea.hbm %s4, %s270
          %s272 = sshll.u32 %s263, 4
          %s273 = int_to_ptr.vmem [resolvable:$true] %s272
          %s274 = sshll.u32 %s271, 4
          %s275 = int_to_ptr.hbm [resolvable:$true] %s274
          %280 = dma.vmem_to_hbm [thread:$0]  %s273, 512, %s275, %s260, 128, 128, 8
        $region40: #{tpu_custom_call.1} parent=35 // pred_fallthru
          _
      $region36: #{tpu_custom_call.1} parent=5 // pred_fallthru
        _
      %p281 = scmp.le.s32.totalorder 2, %s13
      // Predicated region
      $region41: #{tpu_custom_call.1} parent=5 // pred_check
        %p282 = pneg %p281
      $region42: #{tpu_custom_call.1} parent=5 // pred_check_branch
        %284 = sbr.rel (%p282) target = $region44
      $region43: #{tpu_custom_call.1} parent=5 // pred_region
        %s285 = ssub.s32 %s13, 2
        // Predicated region
        $region45: #{tpu_custom_call.1} parent=43 // pred_check
          %p286 = pneg %p131
        $region46: #{tpu_custom_call.1} parent=43 // pred_check_branch
          %288 = sbr.rel (%p286) target = $region48
        $region47: #{tpu_custom_call.1} parent=43 // pred_region
          %s289 = sand.u32 %s116, 1
          %s290 = scalar_lea.sflag [#allocation3], %s289
          %s291 = sand.u32 %s116, 1
          %s292 = smul.addr %s291, 32
          %s293 = scalar_lea.vmem [#allocation2], %s292
          %295 = dma.done %s290, 512
        $region48: #{tpu_custom_call.1} parent=43 // pred_fallthru
          _
      $region44: #{tpu_custom_call.1} parent=5 // pred_fallthru
        _
    $region6: #{tpu_custom_call.1} parent=1 // loop_footer
      %s17 = sadd.s32 1, %s13
    $region7: #{tpu_custom_call.1} parent=1 // loop_footer_branch
      %12 = sbr.rel target = $region3
    $region8: #{tpu_custom_call.1} parent=1 // loop_exit
      _
    %296 = vsyncpa [#allocation3], 1
    %s297 = scalar_lea.sflag [#allocation3], 1
    %298 = vsyncpa %s297, 1

</llo_original>
